<compile_context>
chip_gen: v6e
topology: v6e:2x2x1
jax: 0.10.0
libtpu: 0.0.40
codegen_flags: <defaults>
</compile_context>

<pallas_src>
import jax
import jax.numpy as jnp
from jax.experimental import pallas as pl
from jax.experimental.pallas import tpu as pltpu


_TINY_BYTES = 512 * 1024  # below this, the fused pure-JAX path beats Pallas dispatch overhead


def _budgets():
    """(per-block byte budget, vmem_limit_bytes), generation-aware."""
    vmem_cap = 64 * 1024 * 1024
    try:
        info = pltpu.get_tpu_info()
        vmem_cap = int(getattr(info, "vmem_capacity_bytes", vmem_cap))
    except Exception:
        pass
    if vmem_cap >= 128 * 1024 * 1024:
        # v5e / v6e: 128 MiB VMEM -> bigger blocks amortize per-step overhead.
        return 8 * 1024 * 1024, 64 * 1024 * 1024
    # v7x: 64 MiB per-TC VMEM -> keep headroom (2 in-bufs + 2 out-bufs per block).
    return 4 * 1024 * 1024, 32 * 1024 * 1024


# ---------------------------------------------------------------------------
# Single-pass kernel: whole rows per block.
# ---------------------------------------------------------------------------
def _normalize3d_kernel(x_ref, o_ref):
    # x_ref / o_ref view: (TB, N) — TB whole flattened samples per grid step.
    #
    # NOTE: a partial last row-block reads out-of-bounds rows; each row is
    # independent, garbage rows are computed but dropped by masked writes, so
    # results are correct.  Do NOT add any cross-row reduction here.
    #
    # Pass 1 (reduce): native-dtype read; min/max are exact in bf16, and bf16
    # vregs hold 2x the elements.  Only the tiny (TB, 1) results are upcast.
    xr = x_ref[...]
    mx = jnp.max(xr, axis=-1, keepdims=True).astype(jnp.float32)
    mn = jnp.min(xr, axis=-1, keepdims=True).astype(jnp.float32)
    # One exact reciprocal per row instead of a divide per element.
    scale = pl.reciprocal(mx - mn + 1e-10, approx=False)
    # Pass 2 (apply): fresh read; the f32 upcast happens per-vreg inside this
    # expression instead of living as a whole-block f32 temporary across both passes.
    o_ref[...] = ((x_ref[...].astype(jnp.float32) - mn) * scale).astype(o_ref.dtype)


def _pick_block_rows(b: int, n: int, itemsize: int, block_bytes: int) -> int:
    """Rows per block: VMEM-bounded, multiple of 8, >=4 grid steps when possible,
    minimal padded rows in the final block."""
    if b <= 8:
        # Single grid step covering the whole batch.  NOTE: on v7x one TensorCore
        # idles for such tiny batches (acceptable; total work is small).
        return b
    row_bytes = max(1, n * itemsize)
    cap = max(8, (block_bytes // row_bytes) // 8 * 8)   # VMEM budget cap
    cap = min(cap, (b // 8) * 8)                        # never exceed full batch (rounded down)
    # Keep >= min(4, b//8) grid steps so a dual-TC chip (v7x) gets >= 2 steps per
    # core to pipeline DMA against compute; ~0.35us/step is negligible on 1-TC chips.
    min_steps = min(4, b // 8)
    if min_steps > 1:
        cap = min(cap, max(8, (b // min_steps) // 8 * 8))
    tb = cap
    # Prefer a candidate (multiples of 8 down to tb/2) minimizing padded rows in the
    # final block — padded rows are pure wasted HBM bandwidth on this kernel.
    best, best_pad = tb, (-(-b // tb)) * tb - b
    lo = max(8, ((tb // 2 + 7) // 8) * 8)
    for cand in range(tb - 8, lo - 1, -8):
        pad = (-(-b // cand)) * cand - b
        if pad < best_pad:
            best, best_pad = cand, pad
    return best


def _normalize3d_single_pass(xf: jax.Array, tb: int, vmem_limit: int) -> jax.Array:
    b, n = xf.shape
    itemsize = jnp.dtype(xf.dtype).itemsize
    cost = pl.CostEstimate(
        flops=3 * b * n,
        transcendentals=0,
        bytes_accessed=2 * b * n * itemsize,
    )
    return pl.pallas_call(
        _normalize3d_kernel,
        out_shape=jax.ShapeDtypeStruct((b, n), xf.dtype),
        grid_spec=pltpu.PrefetchScalarGridSpec(
            num_scalar_prefetch=0,
            grid=(pl.cdiv(b, tb),),
            in_specs=[pl.BlockSpec((tb, n), lambda i: (i, 0))],
            out_specs=pl.BlockSpec((tb, n), lambda i: (i, 0)),
        ),
        compiler_params=pltpu.CompilerParams(
            dimension_semantics=("parallel",),
            vmem_limit_bytes=vmem_limit,
        ),
        cost_estimate=cost,
    )(xf)


# ---------------------------------------------------------------------------
# Two-pass (N-tiled) fallback for rows too long to fit a whole-row block in VMEM.
# ---------------------------------------------------------------------------
def _make_reduce_kernel(n: int, tn: int, needs_mask: bool):
    def kernel(x_ref, mn_ref, mx_ref):
        k = pl.program_id(1)

        @pl.when(k == 0)
        def _():
            mn_ref[...] = jnp.full(mn_ref.shape, jnp.inf, dtype=mn_ref.dtype)
            mx_ref[...] = jnp.full(mx_ref.shape, -jnp.inf, dtype=mx_ref.dtype)

        x = x_ref[...]  # native dtype; min/max are exact in bf16
        if needs_mask:
            # Ragged last column block: mask out-of-range lanes so stale VMEM
            # contents (possibly NaN) cannot pollute the running min/max.
            cols = jax.lax.broadcasted_iota(jnp.int32, x.shape, 1) + k * tn
            valid = cols < n
            x_min = jnp.where(valid, x, jnp.array(jnp.inf, dtype=x.dtype))
            x_max = jnp.where(valid, x, jnp.array(-jnp.inf, dtype=x.dtype))
        else:
            x_min = x_max = x
        mn_ref[...] = jnp.minimum(
            mn_ref[...], jnp.min(x_min, axis=-1, keepdims=True).astype(jnp.float32))
        mx_ref[...] = jnp.maximum(
            mx_ref[...], jnp.max(x_max, axis=-1, keepdims=True).astype(jnp.float32))

    return kernel


def _apply_kernel(x_ref, mn_ref, mx_ref, o_ref):
    mn = mn_ref[...]                                   # (TB, 1) f32
    mx = mx_ref[...]
    scale = pl.reciprocal(mx - mn + 1e-10, approx=False)
    o_ref[...] = ((x_ref[...].astype(jnp.float32) - mn) * scale).astype(o_ref.dtype)


def _normalize3d_two_pass(xf: jax.Array, block_bytes: int, vmem_limit: int,
                          tb: int | None = None, tn: int | None = None) -> jax.Array:
    b, n = xf.shape
    itemsize = jnp.dtype(xf.dtype).itemsize
    if tb is None:
        tb = min(b, 8)
    if tn is None:
        tn = max(128, (block_bytes // max(1, tb * itemsize)) // 128 * 128)
        tn = min(tn, ((n + 127) // 128) * 128)
    if tn >= n:
        tn = n
    grid_b = pl.cdiv(b, tb)
    grid_n = pl.cdiv(n, tn)
    needs_mask = (n % tn) != 0

    # Pass 1: per-row running min/max over column tiles (reduction axis last, "arbitrary").
    mn, mx = pl.pallas_call(
        _make_reduce_kernel(n, tn, needs_mask),
        out_shape=(jax.ShapeDtypeStruct((b, 1), jnp.float32),
                   jax.ShapeDtypeStruct((b, 1), jnp.float32)),
        grid_spec=pltpu.PrefetchScalarGridSpec(
            num_scalar_prefetch=0,
            grid=(grid_b, grid_n),
            in_specs=[pl.BlockSpec((tb, tn), lambda i, k: (i, k))],
            out_specs=(pl.BlockSpec((tb, 1), lambda i, k: (i, 0)),
                       pl.BlockSpec((tb, 1), lambda i, k: (i, 0))),
        ),
        compiler_params=pltpu.CompilerParams(
            dimension_semantics=("parallel", "arbitrary"),
            vmem_limit_bytes=vmem_limit,
        ),
        cost_estimate=pl.CostEstimate(flops=2 * b * n, transcendentals=0,
                                      bytes_accessed=b * n * itemsize),
    )(xf)

    # Pass 2: apply (x - mn) * 1/(mx - mn + eps) with a fully parallel 2D grid.
    out = pl.pallas_call(
        _apply_kernel,
        out_shape=jax.ShapeDtypeStruct((b, n), xf.dtype),
        grid_spec=pltpu.PrefetchScalarGridSpec(
            num_scalar_prefetch=0,
            grid=(grid_b, grid_n),
            in_specs=[pl.BlockSpec((tb, tn), lambda i, k: (i, k)),
                      pl.BlockSpec((tb, 1), lambda i, k: (i, 0)),
                      pl.BlockSpec((tb, 1), lambda i, k: (i, 0))],
            out_specs=pl.BlockSpec((tb, tn), lambda i, k: (i, k)),
        ),
        compiler_params=pltpu.CompilerParams(
            dimension_semantics=("parallel", "parallel"),
            vmem_limit_bytes=vmem_limit,
        ),
        cost_estimate=pl.CostEstimate(flops=2 * b * n, transcendentals=0,
                                      bytes_accessed=2 * b * n * itemsize),
    )(xf, mn, mx)
    return out


# ---------------------------------------------------------------------------
# Public API + pure-JAX reference / tiny-input fast path.
# ---------------------------------------------------------------------------
def _normalize3d_ref(x: jax.Array) -> jax.Array:
    b, f, t = x.shape
    xf = x.reshape(b, f * t).astype(jnp.float32)
    mx = jnp.max(xf, axis=1, keepdims=True)
    mn = jnp.min(xf, axis=1, keepdims=True)
    y = (xf - mn) / (mx - mn + 1e-10)
    return y.reshape(b, f, t).astype(x.dtype)


def normalize3d(x: jax.Array) -> jax.Array:
    """Scale each sample of a 3D tensor [B, F, T] to be between 0 and 1."""
    if x.ndim != 3:
        raise ValueError("Input should be 3D: [batch_size X num_features X num_steps]")
    b, f, t = x.shape
    n = f * t
    itemsize = jnp.dtype(x.dtype).itemsize

    # Small/medium inputs: custom-call dispatch + pipeline warm-up dwarf the HBM
    # traffic and XLA fuses this min/max+scale pattern well.
    if b * n * itemsize < _TINY_BYTES:
        return _normalize3d_ref(x)

    block_bytes, vmem_limit = _budgets()
    xf = x.reshape(b, n)  # contiguous => free reshape; lane-dense rows of length F*T

    if min(b, 8) * n * itemsize > block_bytes:
        # Rows so long that even a minimal whole-row block exceeds the VMEM budget.
        out = _normalize3d_two_pass(xf, block_bytes, vmem_limit)
    else:
        tb = _pick_block_rows(b, n, itemsize, block_bytes)
        out = _normalize3d_single_pass(xf, tb, vmem_limit)
    return out.reshape(b, f, t)


if __name__ == "__main__":
    key = jax.random.PRNGKey(0)
    k1, k2, k3, k4, k5 = jax.random.split(key, 5)

    # 1) Public API, single-pass Pallas path (spectrogram-sized batch, > tiny cutoff).
    B, F, T = 32, 64, 320
    x = jax.random.normal(k1, (B, F, T), dtype=jnp.float32) * 3.0 + 1.5
    out = jax.block_until_ready(normalize3d(x))
    ref = _normalize3d_ref(x)
    assert out.shape == (B, F, T)
    assert jnp.allclose(out, ref, atol=1e-5, rtol=1e-5)
    assert float(jnp.min(out)) >= 0.0 and float(jnp.max(out)) <= 1.0 + 1e-6

    # 2) Single-pass kernel directly: batch not a multiple of the row block
    #    (exercises the masked partial last row block).
    B2, F2, T2 = 10, 6, 100
    x2 = jax.random.normal(k2, (B2, F2, T2), dtype=jnp.float32) - 0.7
    out2 = _normalize3d_single_pass(x2.reshape(B2, F2 * T2), tb=8,
                                    vmem_limit=32 * 1024 * 1024)
    out2 = jax.block_until_ready(out2).reshape(B2, F2, T2)
    assert jnp.allclose(out2, _normalize3d_ref(x2), atol=1e-5, rtol=1e-5)

    # 3) Two-pass (N-tiled) fallback directly, with a ragged last column block
    #    (exercises the masked reduction + apply passes).
    B3, F3, T3 = 4, 5, 300
    x3 = jax.random.normal(k3, (B3, F3, T3), dtype=jnp.float32) * 2.0
    out3 = _normalize3d_two_pass(x3.reshape(B3, F3 * T3),
                                 block_bytes=4 * 1024 * 1024,
                                 vmem_limit=32 * 1024 * 1024,
                                 tb=4, tn=512)
    out3 = jax.block_until_ready(out3).reshape(B3, F3, T3)
    assert jnp.allclose(out3, _normalize3d_ref(x3), atol=1e-5, rtol=1e-5)

    # 4) bf16 input through the single-pass kernel (native-dtype reduction pass).
    x4 = (jax.random.normal(k4, (16, 8, 128), dtype=jnp.float32) * 2.0).astype(jnp.bfloat16)
    out4 = _normalize3d_single_pass(x4.reshape(16, 8 * 128), tb=8,
                                    vmem_limit=32 * 1024 * 1024)
    out4 = jax.block_until_ready(out4).reshape(16, 8, 128)
    ref4 = _normalize3d_ref(x4)
    assert jnp.allclose(out4.astype(jnp.float32), ref4.astype(jnp.float32),
                        atol=1e-2, rtol=1e-2)

    # 5) Tiny input consistent with the module docstring: fused pure-JAX fast path.
    x5 = jax.random.normal(k5, (2, 4, 16), dtype=jnp.float32)
    out5 = jax.block_until_ready(normalize3d(x5))
    assert jnp.allclose(out5, _normalize3d_ref(x5), atol=1e-5, rtol=1e-5)

    print("KERNEL_OK")
</pallas_src>

<mosaic_0001>
module attributes {stable_mosaic.version = 11 : i64} {
  func.func @_normalize3d_kernel(%arg0: i32, %arg1: memref<8x20480xf32, #tpu.memory_space<vmem>>, %arg2: memref<8x20480xf32, #tpu.memory_space<vmem>>) attributes {dimension_semantics = [#tpu.dimension_semantics<parallel>], iteration_bounds = array<i64: 4>, scalar_prefetch = 0 : i64, scratch_operands = 0 : i64, tpu.core_type = #tpu.core_type<tc>, window_params = [{transform_indices = @transform_0, window_bounds = array<i64: 8, 20480>}, {transform_indices = @transform_1, window_bounds = array<i64: 8, 20480>}]} {
    %c0 = arith.constant 0 : index
    %c0_0 = arith.constant 0 : index
    %0 = vector.load %arg1[%c0, %c0_0] : memref<8x20480xf32, #tpu.memory_space<vmem>>, vector<8x20480xf32>
    %cst = arith.constant dense<0xFF800000> : vector<8xf32>
    %1 = vector.multi_reduction <maximumf>, %0, %cst [1] : vector<8x20480xf32> to vector<8xf32>
    %2 = vector.shape_cast %1 : vector<8xf32> to vector<8x1xf32>
    %cst_1 = arith.constant dense<0x7F800000> : vector<8xf32>
    %3 = vector.multi_reduction <minimumf>, %0, %cst_1 [1] : vector<8x20480xf32> to vector<8xf32>
    %4 = vector.shape_cast %3 : vector<8xf32> to vector<8x1xf32>
    %5 = arith.subf %2, %4 : vector<8x1xf32>
    %cst_2 = arith.constant 1.000000e-10 : f32
    %6 = vector.broadcast %cst_2 : f32 to vector<8x1xf32>
    %7 = arith.addf %5, %6 : vector<8x1xf32>
    %8 = tpu.reciprocal %7 : vector<8x1xf32> -> vector<8x1xf32>
    %c0_3 = arith.constant 0 : index
    %c0_4 = arith.constant 0 : index
    %9 = vector.load %arg1[%c0_3, %c0_4] : memref<8x20480xf32, #tpu.memory_space<vmem>>, vector<8x20480xf32>
    %10 = vector.broadcast %4 : vector<8x1xf32> to vector<8x20480xf32>
    %11 = arith.subf %9, %10 : vector<8x20480xf32>
    %12 = vector.broadcast %8 : vector<8x1xf32> to vector<8x20480xf32>
    %13 = arith.mulf %11, %12 : vector<8x20480xf32>
    %c0_5 = arith.constant 0 : index
    %c0_6 = arith.constant 0 : index
    %14 = vector.load %arg2[%c0_5, %c0_6] : memref<8x20480xf32, #tpu.memory_space<vmem>>, vector<8x20480xf32>
    tpu.vector_store %arg2[%c0_5, %c0_6], %13 {strides = array<i32>} : memref<8x20480xf32, #tpu.memory_space<vmem>>, vector<8x20480xf32>,
    return
  }
  func.func @transform_0(%arg0: i32) -> (i32, i32) {
    %c0_i32 = arith.constant 0 : i32
    %c0_i32_0 = arith.constant 0 : i32
    return %arg0, %c0_i32 : i32, i32
  }
  func.func @transform_1(%arg0: i32) -> (i32, i32) {
    %c0_i32 = arith.constant 0 : i32
    %c0_i32_0 = arith.constant 0 : i32
    return %arg0, %c0_i32 : i32, i32
  }
}

</mosaic_0001>

<llo_original>
// kernel: tpu_custom_call.1
$region0: #{tpu_custom_call.1}
  #allocation0 [shape = 'u32[]', space=smem, size = 0x4, offset = 0x4, fixed_abs, tag = 'smem constant byte address 0x4 - core index']
  #allocation1 [shape = 'u32[144,128]{1,0:T(1,128)}', space=vmem, size = 0x12000, scoped, tag = 'internal scratch']
  %s0 = inlined_call_operand.hbm [shape: f32[32,20480], index: 0, kind: input, shape index: {}]
  %s1 = inlined_call_operand.hbm [shape: f32[32,20480], index: 1, kind: output, shape index: {}]
  %s2 = sld [smem:[#allocation0]]
  $region41: #{tpu_custom_call.1} parent=0
    _
  %s4 = ssub.s32 1, %s2
  %s5 = scalar_select 0, %s4, %s2
  $region1: #{tpu_custom_call.1} parent=0
    #allocation2 [shape = 'u8[1310720]{0}', space=vmem, size = 0x140000, scoped, tag = 'input window, operand 0']
    #allocation3 [shape = 's32[2]{0}', space=sflag, size = 0x8, scoped, tag = 'scoped memory for tpu_custom_call.1']
    #allocation4 [shape = 's32[2]{0}', space=sflag, size = 0x8, scoped, tag = 'scoped memory for tpu_custom_call.1']
    #allocation5 [shape = 'u8[1310720]{0}', space=vmem, size = 0x140000, scoped, tag = 'output window, operand 0']
    %6 = vsyncpa [#allocation3], 0
    %s7 = scalar_lea.sflag [#allocation3], 1
    %8 = vsyncpa %s7, 0
    %9 = vsyncpa [#allocation4], 0
    %s10 = scalar_lea.sflag [#allocation4], 1
    %11 = vsyncpa %s10, 0
    loop: start=0, step=1, limit=6
    $region2: #{tpu_custom_call.1} parent=1 // loop_pre_header
      _
    $region3: #{tpu_custom_call.1} parent=1 // loop_header
      %s13 = sphi 0, %s17
      %p14 = scmp.ge.s32.totalorder %s13, 6
      %s23 = sphi 0, %s25
      %s26 = sphi 0, %s23
      %s27 = sphi 0, %s26
      %s43 = sphi 0, %s27
      %s49 = sphi 0, %s51
      %s52 = sphi 0, %s49
      %s53 = sphi 0, %s52
      %s69 = sphi 0, %s53
    $region4: #{tpu_custom_call.1} parent=1 // loop_header_branch
      %16 = sbr.rel (%p14) target = $region8
    $region5: #{tpu_custom_call.1} parent=1 // loop_body
      %s18 = ssub.s32 %s13, 1
      %s19 = ssub.s32 %s13, 2
      %s20 = sadd.s32 %s13, 1
      %s21 = ssub.s32 %s13, %s20
      %p22 = scmp.eq.s32.totalorder %s21, 0
      %s24 = sadd.s32 %s23, 1
      %s25 = scalar_select %p22, %s23, %s24
      %p28 = pneg %p22
      %p29 = scmp.eq.s32.totalorder %s13, 3
      %p30 = por %p28, %p29
      %p31 = scmp.ne.s32.totalorder %s23, %s26
      %p32 = scmp.eq.s32.totalorder %s13, 0
      %p33 = por %p31, %p32
      %p34 = scmp.ne.s32.totalorder %s23, %s26
      %p35 = scmp.eq.s32.totalorder %s18, 3
      %p36 = por %p34, %p35
      %p37 = scmp.ne.s32.totalorder %s26, %s27
      %p38 = scmp.eq.s32.totalorder %s18, 0
      %p39 = por %p37, %p38
      %p40 = scmp.ne.s32.totalorder %s26, %s27
      %p41 = scmp.eq.s32.totalorder %s19, 3
      %p42 = por %p40, %p41
      %p44 = scmp.ne.s32.totalorder %s27, %s43
      %p45 = scmp.eq.s32.totalorder %s19, 0
      %p46 = por %p44, %p45
      %s47 = ssub.s32 %s13, %s20
      %p48 = scmp.eq.s32.totalorder %s47, 0
      %s50 = sadd.s32 %s49, 1
      %s51 = scalar_select %p48, %s49, %s50
      %p54 = pneg %p48
      %p55 = scmp.eq.s32.totalorder %s13, 3
      %p56 = por %p54, %p55
      %p57 = scmp.ne.s32.totalorder %s49, %s52
      %p58 = scmp.eq.s32.totalorder %s13, 0
      %p59 = por %p57, %p58
      %p60 = scmp.ne.s32.totalorder %s49, %s52
      %p61 = scmp.eq.s32.totalorder %s18, 3
      %p62 = por %p60, %p61
      %p63 = scmp.ne.s32.totalorder %s52, %s53
      %p64 = scmp.eq.s32.totalorder %s18, 0
      %p65 = por %p63, %p64
      %p66 = scmp.ne.s32.totalorder %s52, %s53
      %p67 = scmp.eq.s32.totalorder %s19, 3
      %p68 = por %p66, %p67
      %p70 = scmp.ne.s32.totalorder %s53, %s69
      %p71 = scmp.eq.s32.totalorder %s19, 0
      %p72 = por %p70, %p71
      %p73 = scmp.le.s32.totalorder 1, %s13
      %p74 = scmp.lt.s32.totalorder %s13, 5
      %p75 = pnand %p73, %p74
      %p76 = pneg %p75
      // Predicated region
      $region9: #{tpu_custom_call.1} parent=5 // pred_check
        _
      $region10: #{tpu_custom_call.1} parent=5 // pred_check_branch
        %78 = sbr.rel (%p75) target = $region12
      $region11: #{tpu_custom_call.1} parent=5 // pred_region
        %s79 = ssub.s32 %s13, 1
      $region12: #{tpu_custom_call.1} parent=5 // pred_fallthru
        _
      %p80 = scmp.lt.s32.totalorder %s13, 4
      // Predicated region
      $region13: #{tpu_custom_call.1} parent=5 // pred_check
        %p81 = pneg %p80
      $region14: #{tpu_custom_call.1} parent=5 // pred_check_branch
        %83 = sbr.rel (%p81) target = $region16
      $region15: #{tpu_custom_call.1} parent=5 // pred_region
        // Predicated region
        $region17: #{tpu_custom_call.1} parent=15 // pred_check
          %p84 = pneg %p33
        $region18: #{tpu_custom_call.1} parent=15 // pred_check_branch
          %86 = sbr.rel (%p84) target = $region20
        $region19: #{tpu_custom_call.1} parent=15 // pred_region
          %s87 = sand.u32 %s23, 1
          %s88 = scalar_lea.sflag [#allocation3], %s87
          %s89 = sand.u32 %s23, 1
          %s90 = smul.addr %s89, 1280
          %s91 = scalar_lea.vmem [#allocation2], %s90
          %s93 = ssub.s32 20480, 20480
          %94 = vsyncadd %s88, %s93
          %s95 = smul.addr %s13, 160
          %s96 = smul.addr %s95, 128
          %s97 = scalar_lea.hbm %s0, %s96
          %s99 = sshll.u32 %s91, 4
          %s100 = int_to_ptr.vmem [resolvable:$true] %s99
          %102 = dma.hbm_to_vmem [thread:$0]  %s97, 20480, %s100, %s88
        $region20: #{tpu_custom_call.1} parent=15 // pred_fallthru
          _
      $region16: #{tpu_custom_call.1} parent=5 // pred_fallthru
        _
      %p103 = scmp.le.s32.totalorder 1, %s13
      %p104 = scmp.lt.s32.totalorder %s13, 5
      %p105 = pnand %p103, %p104
      %p106 = pneg %p105
      // Predicated region
      $region21: #{tpu_custom_call.1} parent=5 // pred_check
        _
      $region22: #{tpu_custom_call.1} parent=5 // pred_check_branch
        %108 = sbr.rel (%p105) target = $region24
      $region23: #{tpu_custom_call.1} parent=5 // pred_region
        %s109 = ssub.s32 %s13, 1
        %s110 = sand.u32 %s26, 1
        %s111 = scalar_lea.sflag [#allocation3], %s110
        %s112 = sand.u32 %s26, 1
        %s113 = smul.addr %s112, 1280
        %s114 = scalar_lea.vmem [#allocation2], %s113
        // Predicated region
        $region25: #{tpu_custom_call.1} parent=23 // pred_check
          %p115 = pneg %p39
        $region26: #{tpu_custom_call.1} parent=23 // pred_check_branch
          %117 = sbr.rel (%p115) target = $region28
        $region27: #{tpu_custom_call.1} parent=23 // pred_region
          %118 = dma.done %s111, 20480
        $region28: #{tpu_custom_call.1} parent=23 // pred_fallthru
          _
        %s119 = sand.u32 %s26, 1
        %s120 = scalar_lea.sflag [#allocation3], %s119
        %s121 = sand.u32 %s26, 1
        %s122 = smul.addr %s121, 1280
        %s123 = scalar_lea.vmem [#allocation2], %s122
        %p124 = pneg %p39
        %p125 = pneg %p36
        %p126 = pneg %p65
        %p127 = pneg %p62
        %s128 = sand.u32 %s52, 1
        %s129 = scalar_lea.sflag [#allocation4], %s128
        %s130 = sand.u32 %s52, 1
        %s131 = smul.addr %s130, 1280
        %s132 = scalar_lea.vmem [#allocation5], %s131
        %v133 = vld [vmem:[%s114] sm:$0xff]
        %v134 = vld [vmem:[%s114 + $0x8] sm:$0xff]
        %v135 = vld [vmem:[%s114 + $0x10] sm:$0xff]
        %v136 = vld [vmem:[%s114 + $0x18] sm:$0xff]
        %v137 = vld [vmem:[%s114 + $0x20] sm:$0xff]
        %v138 = vld [vmem:[%s114 + $0x28] sm:$0xff]
        %v139 = vld [vmem:[%s114 + $0x30] sm:$0xff]
        %v140 = vld [vmem:[%s114 + $0x38] sm:$0xff]
        %v141 = vld [vmem:[%s114 + $0x40] sm:$0xff]
        %v142 = vld [vmem:[%s114 + $0x48] sm:$0xff]
        %v143 = vld [vmem:[%s114 + $0x50] sm:$0xff]
        %v144 = vld [vmem:[%s114 + $0x58] sm:$0xff]
        %v145 = vld [vmem:[%s114 + $0x60] sm:$0xff]
        %v146 = vld [vmem:[%s114 + $0x68] sm:$0xff]
        %v147 = vld [vmem:[%s114 + $0x70] sm:$0xff]
        %v148 = vld [vmem:[%s114 + $0x78] sm:$0xff]
        %v149 = vld [vmem:[%s114 + $0x80] sm:$0xff]
        %v150 = vld [vmem:[%s114 + $0x88] sm:$0xff]
        %v151 = vld [vmem:[%s114 + $0x90] sm:$0xff]
        %v152 = vld [vmem:[%s114 + $0x98] sm:$0xff]
        %v153 = vld [vmem:[%s114 + $0xa0] sm:$0xff]
        %v154 = vld [vmem:[%s114 + $0xa8] sm:$0xff]
        %v155 = vld [vmem:[%s114 + $0xb0] sm:$0xff]
        %v156 = vld [vmem:[%s114 + $0xb8] sm:$0xff]
        %v157 = vld [vmem:[%s114 + $0xc0] sm:$0xff]
        %v158 = vld [vmem:[%s114 + $0xc8] sm:$0xff]
        %v159 = vld [vmem:[%s114 + $0xd0] sm:$0xff]
        %v160 = vld [vmem:[%s114 + $0xd8] sm:$0xff]
        %v161 = vld [vmem:[%s114 + $0xe0] sm:$0xff]
        %v162 = vld [vmem:[%s114 + $0xe8] sm:$0xff]
        %v163 = vld [vmem:[%s114 + $0xf0] sm:$0xff]
        %v164 = vld [vmem:[%s114 + $0xf8] sm:$0xff]
        %v165 = vld [vmem:[%s114 + $0x100] sm:$0xff]
        %v166 = vld [vmem:[%s114 + $0x108] sm:$0xff]
        %v167 = vld [vmem:[%s114 + $0x110] sm:$0xff]
        %v168 = vld [vmem:[%s114 + $0x118] sm:$0xff]
        %v169 = vld [vmem:[%s114 + $0x120] sm:$0xff]
        %v170 = vld [vmem:[%s114 + $0x128] sm:$0xff]
        %v171 = vld [vmem:[%s114 + $0x130] sm:$0xff]
        %v172 = vld [vmem:[%s114 + $0x138] sm:$0xff]
        %v173 = vld [vmem:[%s114 + $0x140] sm:$0xff]
        %v174 = vld [vmem:[%s114 + $0x148] sm:$0xff]
        %v175 = vld [vmem:[%s114 + $0x150] sm:$0xff]
        %v176 = vld [vmem:[%s114 + $0x158] sm:$0xff]
        %v177 = vld [vmem:[%s114 + $0x160] sm:$0xff]
        %v178 = vld [vmem:[%s114 + $0x168] sm:$0xff]
        %v179 = vld [vmem:[%s114 + $0x170] sm:$0xff]
        %v180 = vld [vmem:[%s114 + $0x178] sm:$0xff]
        %v181 = vld [vmem:[%s114 + $0x180] sm:$0xff]
        %v182 = vld [vmem:[%s114 + $0x188] sm:$0xff]
        %v183 = vld [vmem:[%s114 + $0x190] sm:$0xff]
        %v184 = vld [vmem:[%s114 + $0x198] sm:$0xff]
        %v185 = vld [vmem:[%s114 + $0x1a0] sm:$0xff]
        %v186 = vld [vmem:[%s114 + $0x1a8] sm:$0xff]
        %v187 = vld [vmem:[%s114 + $0x1b0] sm:$0xff]
        %v188 = vld [vmem:[%s114 + $0x1b8] sm:$0xff]
        %v189 = vld [vmem:[%s114 + $0x1c0] sm:$0xff]
        %v190 = vld [vmem:[%s114 + $0x1c8] sm:$0xff]
        %v191 = vld [vmem:[%s114 + $0x1d0] sm:$0xff]
        %v192 = vld [vmem:[%s114 + $0x1d8] sm:$0xff]
        %v193 = vld [vmem:[%s114 + $0x1e0] sm:$0xff]
        %v194 = vld [vmem:[%s114 + $0x1e8] sm:$0xff]
        %v195 = vld [vmem:[%s114 + $0x1f0] sm:$0xff]
        %v196 = vld [vmem:[%s114 + $0x1f8] sm:$0xff]
        %v197 = vld [vmem:[%s114 + $0x200] sm:$0xff]
        %v198 = vld [vmem:[%s114 + $0x208] sm:$0xff]
        %v199 = vld [vmem:[%s114 + $0x210] sm:$0xff]
        %v200 = vld [vmem:[%s114 + $0x218] sm:$0xff]
        %v201 = vld [vmem:[%s114 + $0x220] sm:$0xff]
        %v202 = vld [vmem:[%s114 + $0x228] sm:$0xff]
        %v203 = vld [vmem:[%s114 + $0x230] sm:$0xff]
        %v204 = vld [vmem:[%s114 + $0x238] sm:$0xff]
        %v205 = vld [vmem:[%s114 + $0x240] sm:$0xff]
        %v206 = vld [vmem:[%s114 + $0x248] sm:$0xff]
        %v207 = vld [vmem:[%s114 + $0x250] sm:$0xff]
        %v208 = vld [vmem:[%s114 + $0x258] sm:$0xff]
        %v209 = vld [vmem:[%s114 + $0x260] sm:$0xff]
        %v210 = vld [vmem:[%s114 + $0x268] sm:$0xff]
        %v211 = vld [vmem:[%s114 + $0x270] sm:$0xff]
        %v212 = vld [vmem:[%s114 + $0x278] sm:$0xff]
        %v213 = vld [vmem:[%s114 + $0x280] sm:$0xff]
        %v214 = vld [vmem:[%s114 + $0x288] sm:$0xff]
        %v215 = vld [vmem:[%s114 + $0x290] sm:$0xff]
        %v216 = vld [vmem:[%s114 + $0x298] sm:$0xff]
        %v217 = vld [vmem:[%s114 + $0x2a0] sm:$0xff]
        %v218 = vld [vmem:[%s114 + $0x2a8] sm:$0xff]
        %v219 = vld [vmem:[%s114 + $0x2b0] sm:$0xff]
        %v220 = vld [vmem:[%s114 + $0x2b8] sm:$0xff]
        %v221 = vld [vmem:[%s114 + $0x2c0] sm:$0xff]
        %v222 = vld [vmem:[%s114 + $0x2c8] sm:$0xff]
        %v223 = vld [vmem:[%s114 + $0x2d0] sm:$0xff]
        %v224 = vld [vmem:[%s114 + $0x2d8] sm:$0xff]
        %v225 = vld [vmem:[%s114 + $0x2e0] sm:$0xff]
        %v226 = vld [vmem:[%s114 + $0x2e8] sm:$0xff]
        %v227 = vld [vmem:[%s114 + $0x2f0] sm:$0xff]
        %v228 = vld [vmem:[%s114 + $0x2f8] sm:$0xff]
        %v229 = vld [vmem:[%s114 + $0x300] sm:$0xff]
        %v230 = vld [vmem:[%s114 + $0x308] sm:$0xff]
        %v231 = vld [vmem:[%s114 + $0x310] sm:$0xff]
        %v232 = vld [vmem:[%s114 + $0x318] sm:$0xff]
        %v233 = vld [vmem:[%s114 + $0x320] sm:$0xff]
        %v234 = vld [vmem:[%s114 + $0x328] sm:$0xff]
        %v235 = vld [vmem:[%s114 + $0x330] sm:$0xff]
        %v236 = vld [vmem:[%s114 + $0x338] sm:$0xff]
        %v237 = vld [vmem:[%s114 + $0x340] sm:$0xff]
        %v238 = vld [vmem:[%s114 + $0x348] sm:$0xff]
        %v239 = vld [vmem:[%s114 + $0x350] sm:$0xff]
        %v240 = vld [vmem:[%s114 + $0x358] sm:$0xff]
        %v241 = vld [vmem:[%s114 + $0x360] sm:$0xff]
        %v242 = vld [vmem:[%s114 + $0x368] sm:$0xff]
        %v243 = vld [vmem:[%s114 + $0x370] sm:$0xff]
        %v244 = vld [vmem:[%s114 + $0x378] sm:$0xff]
        %v245 = vld [vmem:[%s114 + $0x380] sm:$0xff]
        %v246 = vld [vmem:[%s114 + $0x388] sm:$0xff]
        %v247 = vld [vmem:[%s114 + $0x390] sm:$0xff]
        %v248 = vld [vmem:[%s114 + $0x398] sm:$0xff]
        %v249 = vld [vmem:[%s114 + $0x3a0] sm:$0xff]
        %v250 = vld [vmem:[%s114 + $0x3a8] sm:$0xff]
        %v251 = vld [vmem:[%s114 + $0x3b0] sm:$0xff]
        %v252 = vld [vmem:[%s114 + $0x3b8] sm:$0xff]
        %v253 = vld [vmem:[%s114 + $0x3c0] sm:$0xff]
        %v254 = vld [vmem:[%s114 + $0x3c8] sm:$0xff]
        %v255 = vld [vmem:[%s114 + $0x3d0] sm:$0xff]
        %v256 = vld [vmem:[%s114 + $0x3d8] sm:$0xff]
        %v257 = vld [vmem:[%s114 + $0x3e0] sm:$0xff]
        %v258 = vld [vmem:[%s114 + $0x3e8] sm:$0xff]
        %v259 = vld [vmem:[%s114 + $0x3f0] sm:$0xff]
        %v260 = vld [vmem:[%s114 + $0x3f8] sm:$0xff]
        %v261 = vld [vmem:[%s114 + $0x400] sm:$0xff]
        %v262 = vld [vmem:[%s114 + $0x408] sm:$0xff]
        %v263 = vld [vmem:[%s114 + $0x410] sm:$0xff]
        %v264 = vld [vmem:[%s114 + $0x418] sm:$0xff]
        %v265 = vld [vmem:[%s114 + $0x420] sm:$0xff]
        %v266 = vld [vmem:[%s114 + $0x428] sm:$0xff]
        %v267 = vld [vmem:[%s114 + $0x430] sm:$0xff]
        %v268 = vld [vmem:[%s114 + $0x438] sm:$0xff]
        %v269 = vld [vmem:[%s114 + $0x440] sm:$0xff]
        %v270 = vld [vmem:[%s114 + $0x448] sm:$0xff]
        %v271 = vld [vmem:[%s114 + $0x450] sm:$0xff]
        %v272 = vld [vmem:[%s114 + $0x458] sm:$0xff]
        %v273 = vld [vmem:[%s114 + $0x460] sm:$0xff]
        %v274 = vld [vmem:[%s114 + $0x468] sm:$0xff]
        %v275 = vld [vmem:[%s114 + $0x470] sm:$0xff]
        %v276 = vld [vmem:[%s114 + $0x478] sm:$0xff]
        %v277 = vld [vmem:[%s114 + $0x480] sm:$0xff]
        %v278 = vld [vmem:[%s114 + $0x488] sm:$0xff]
        %v279 = vld [vmem:[%s114 + $0x490] sm:$0xff]
        %v280 = vld [vmem:[%s114 + $0x498] sm:$0xff]
        %v281 = vld [vmem:[%s114 + $0x4a0] sm:$0xff]
        %v282 = vld [vmem:[%s114 + $0x4a8] sm:$0xff]
        %v283 = vld [vmem:[%s114 + $0x4b0] sm:$0xff]
        %v284 = vld [vmem:[%s114 + $0x4b8] sm:$0xff]
        %v285 = vld [vmem:[%s114 + $0x4c0] sm:$0xff]
        %v286 = vld [vmem:[%s114 + $0x4c8] sm:$0xff]
        %v287 = vld [vmem:[%s114 + $0x4d0] sm:$0xff]
        %v288 = vld [vmem:[%s114 + $0x4d8] sm:$0xff]
        %v289 = vld [vmem:[%s114 + $0x4e0] sm:$0xff]
        %v290 = vld [vmem:[%s114 + $0x4e8] sm:$0xff]
        %v291 = vld [vmem:[%s114 + $0x4f0] sm:$0xff]
        %v292 = vld [vmem:[%s114 + $0x4f8] sm:$0xff]
        %v293 = vmax.f32 %v133, %v137
        %v294 = vmax.f32 %v134, %v138
        %v295 = vmax.f32 %v135, %v139
        %v296 = vmax.f32 %v136, %v140
        %v297 = vmax.f32 %v293, %v141
        %v298 = vmax.f32 %v294, %v142
        %v299 = vmax.f32 %v295, %v143
        %v300 = vmax.f32 %v296, %v144
        %v301 = vmax.f32 %v297, %v145
        %v302 = vmax.f32 %v298, %v146
        %v303 = vmax.f32 %v299, %v147
        %v304 = vmax.f32 %v300, %v148
        %v305 = vmax.f32 %v301, %v149
        %v306 = vmax.f32 %v302, %v150
        %v307 = vmax.f32 %v303, %v151
        %v308 = vmax.f32 %v304, %v152
        %v309 = vmax.f32 %v305, %v153
        %v310 = vmax.f32 %v306, %v154
        %v311 = vmax.f32 %v307, %v155
        %v312 = vmax.f32 %v308, %v156
        %v313 = vmax.f32 %v309, %v157
        %v314 = vmax.f32 %v310, %v158
        %v315 = vmax.f32 %v311, %v159
        %v316 = vmax.f32 %v312, %v160
        %v317 = vmax.f32 %v313, %v161
        %v318 = vmax.f32 %v314, %v162
        %v319 = vmax.f32 %v315, %v163
        %v320 = vmax.f32 %v316, %v164
        %v321 = vmax.f32 %v317, %v165
        %v322 = vmax.f32 %v318, %v166
        %v323 = vmax.f32 %v319, %v167
        %v324 = vmax.f32 %v320, %v168
        %v325 = vmax.f32 %v321, %v169
        %v326 = vmax.f32 %v322, %v170
        %v327 = vmax.f32 %v323, %v171
        %v328 = vmax.f32 %v324, %v172
        %v329 = vmax.f32 %v325, %v173
        %v330 = vmax.f32 %v326, %v174
        %v331 = vmax.f32 %v327, %v175
        %v332 = vmax.f32 %v328, %v176
        %v333 = vmax.f32 %v329, %v177
        %v334 = vmax.f32 %v330, %v178
        %v335 = vmax.f32 %v331, %v179
        %v336 = vmax.f32 %v332, %v180
        %v337 = vmax.f32 %v333, %v181
        %v338 = vmax.f32 %v334, %v182
        %v339 = vmax.f32 %v335, %v183
        %v340 = vmax.f32 %v336, %v184
        %v341 = vmax.f32 %v337, %v185
        %v342 = vmax.f32 %v338, %v186
        %v343 = vmax.f32 %v339, %v187
        %v344 = vmax.f32 %v340, %v188
        %v345 = vmax.f32 %v341, %v189
        %v346 = vmax.f32 %v342, %v190
        %v347 = vmax.f32 %v343, %v191
        %v348 = vmax.f32 %v344, %v192
        %v349 = vmax.f32 %v345, %v193
        %v350 = vmax.f32 %v346, %v194
        %v351 = vmax.f32 %v347, %v195
        %v352 = vmax.f32 %v348, %v196
        %v353 = vmax.f32 %v349, %v197
        %v354 = vmax.f32 %v350, %v198
        %v355 = vmax.f32 %v351, %v199
        %v356 = vmax.f32 %v352, %v200
        %v357 = vmax.f32 %v353, %v201
        %v358 = vmax.f32 %v354, %v202
        %v359 = vmax.f32 %v355, %v203
        %v360 = vmax.f32 %v356, %v204
        %v361 = vmax.f32 %v357, %v205
        %v362 = vmax.f32 %v358, %v206
        %v363 = vmax.f32 %v359, %v207
        %v364 = vmax.f32 %v360, %v208
        %v365 = vmax.f32 %v361, %v209
        %v366 = vmax.f32 %v362, %v210
        %v367 = vmax.f32 %v363, %v211
        %v368 = vmax.f32 %v364, %v212
        %v369 = vmax.f32 %v365, %v213
        %v370 = vmax.f32 %v366, %v214
        %v371 = vmax.f32 %v367, %v215
        %v372 = vmax.f32 %v368, %v216
        %v373 = vmax.f32 %v369, %v217
        %v374 = vmax.f32 %v370, %v218
        %v375 = vmax.f32 %v371, %v219
        %v376 = vmax.f32 %v372, %v220
        %v377 = vmax.f32 %v373, %v221
        %v378 = vmax.f32 %v374, %v222
        %v379 = vmax.f32 %v375, %v223
        %v380 = vmax.f32 %v376, %v224
        %v381 = vmax.f32 %v377, %v225
        %v382 = vmax.f32 %v378, %v226
        %v383 = vmax.f32 %v379, %v227
        %v384 = vmax.f32 %v380, %v228
        %v385 = vmax.f32 %v381, %v229
        %v386 = vmax.f32 %v382, %v230
        %v387 = vmax.f32 %v383, %v231
        %v388 = vmax.f32 %v384, %v232
        %v389 = vmax.f32 %v385, %v233
        %v390 = vmax.f32 %v386, %v234
        %v391 = vmax.f32 %v387, %v235
        %v392 = vmax.f32 %v388, %v236
        %v393 = vmax.f32 %v389, %v237
        %v394 = vmax.f32 %v390, %v238
        %v395 = vmax.f32 %v391, %v239
        %v396 = vmax.f32 %v392, %v240
        %v397 = vmax.f32 %v393, %v241
        %v398 = vmax.f32 %v394, %v242
        %v399 = vmax.f32 %v395, %v243
        %v400 = vmax.f32 %v396, %v244
        %v401 = vmax.f32 %v397, %v245
        %v402 = vmax.f32 %v398, %v246
        %v403 = vmax.f32 %v399, %v247
        %v404 = vmax.f32 %v400, %v248
        %v405 = vmax.f32 %v401, %v249
        %v406 = vmax.f32 %v402, %v250
        %v407 = vmax.f32 %v403, %v251
        %v408 = vmax.f32 %v404, %v252
        %v409 = vmax.f32 %v405, %v253
        %v410 = vmax.f32 %v406, %v254
        %v411 = vmax.f32 %v407, %v255
        %v412 = vmax.f32 %v408, %v256
        %v413 = vmax.f32 %v409, %v257
        %v414 = vmax.f32 %v410, %v258
        %v415 = vmax.f32 %v411, %v259
        %v416 = vmax.f32 %v412, %v260
        %v417 = vmax.f32 %v413, %v261
        %v418 = vmax.f32 %v414, %v262
        %v419 = vmax.f32 %v415, %v263
        %v420 = vmax.f32 %v416, %v264
        %v421 = vmax.f32 %v417, %v265
        %v422 = vmax.f32 %v418, %v266
        %v423 = vmax.f32 %v419, %v267
        %v424 = vmax.f32 %v420, %v268
        %v425 = vmax.f32 %v421, %v269
        %v426 = vmax.f32 %v422, %v270
        %v427 = vmax.f32 %v423, %v271
        %v428 = vmax.f32 %v424, %v272
        %v429 = vmax.f32 %v425, %v273
        %v430 = vmax.f32 %v426, %v274
        %v431 = vmax.f32 %v427, %v275
        %v432 = vmax.f32 %v428, %v276
        %v433 = vmax.f32 %v429, %v277
        %v434 = vmax.f32 %v430, %v278
        %v435 = vmax.f32 %v431, %v279
        %v436 = vmax.f32 %v432, %v280
        %v437 = vmax.f32 %v433, %v281
        %v438 = vmax.f32 %v434, %v282
        %v439 = vmax.f32 %v435, %v283
        %v440 = vmax.f32 %v436, %v284
        %v441 = vmax.f32 %v437, %v285
        %v442 = vmax.f32 %v438, %v286
        %v443 = vmax.f32 %v439, %v287
        %v444 = vmax.f32 %v440, %v288
        %v445 = vmax.f32 %v441, %v289
        %v446 = vmax.f32 %v442, %v290
        %v447 = vmax.f32 %v443, %v291
        %v448 = vmax.f32 %v444, %v292
        %v449 = vmax.f32 %v445, %v446
        %v450 = vmax.f32 %v447, %v448
        %v451 = vmax.f32 %v449, %v450
        %452 = vmax.xlane.f32.xlu0 %v451
        %v453 = vpop.xlane.xlu0 %452
        %v454 = vmin.f32 %v133, %v137
        %v455 = vmin.f32 %v134, %v138
        %v456 = vmin.f32 %v135, %v139
        %v457 = vmin.f32 %v136, %v140
        %v458 = vmin.f32 %v454, %v141
        %v459 = vmin.f32 %v455, %v142
        %v460 = vmin.f32 %v456, %v143
        %v461 = vmin.f32 %v457, %v144
        %v462 = vmin.f32 %v458, %v145
        %v463 = vmin.f32 %v459, %v146
        %v464 = vmin.f32 %v460, %v147
        %v465 = vmin.f32 %v461, %v148
        %v466 = vmin.f32 %v462, %v149
        %v467 = vmin.f32 %v463, %v150
        %v468 = vmin.f32 %v464, %v151
        %v469 = vmin.f32 %v465, %v152
        %v470 = vmin.f32 %v466, %v153
        %v471 = vmin.f32 %v467, %v154
        %v472 = vmin.f32 %v468, %v155
        %v473 = vmin.f32 %v469, %v156
        %v474 = vmin.f32 %v470, %v157
        %v475 = vmin.f32 %v471, %v158
        %v476 = vmin.f32 %v472, %v159
        %v477 = vmin.f32 %v473, %v160
        %v478 = vmin.f32 %v474, %v161
        %v479 = vmin.f32 %v475, %v162
        %v480 = vmin.f32 %v476, %v163
        %v481 = vmin.f32 %v477, %v164
        %v482 = vmin.f32 %v478, %v165
        %v483 = vmin.f32 %v479, %v166
        %v484 = vmin.f32 %v480, %v167
        %v485 = vmin.f32 %v481, %v168
        %v486 = vmin.f32 %v482, %v169
        %v487 = vmin.f32 %v483, %v170
        %v488 = vmin.f32 %v484, %v171
        %v489 = vmin.f32 %v485, %v172
        %v490 = vmin.f32 %v486, %v173
        %v491 = vmin.f32 %v487, %v174
        %v492 = vmin.f32 %v488, %v175
        %v493 = vmin.f32 %v489, %v176
        %v494 = vmin.f32 %v490, %v177
        %v495 = vmin.f32 %v491, %v178
        %v496 = vmin.f32 %v492, %v179
        %v497 = vmin.f32 %v493, %v180
        %v498 = vmin.f32 %v494, %v181
        %v499 = vmin.f32 %v495, %v182
        %v500 = vmin.f32 %v496, %v183
        %v501 = vmin.f32 %v497, %v184
        %v502 = vmin.f32 %v498, %v185
        %v503 = vmin.f32 %v499, %v186
        %v504 = vmin.f32 %v500, %v187
        %v505 = vmin.f32 %v501, %v188
        %v506 = vmin.f32 %v502, %v189
        %v507 = vmin.f32 %v503, %v190
        %v508 = vmin.f32 %v504, %v191
        %v509 = vmin.f32 %v505, %v192
        %v510 = vmin.f32 %v506, %v193
        %v511 = vmin.f32 %v507, %v194
        %v512 = vmin.f32 %v508, %v195
        %v513 = vmin.f32 %v509, %v196
        %v514 = vmin.f32 %v510, %v197
        %v515 = vmin.f32 %v511, %v198
        %v516 = vmin.f32 %v512, %v199
        %v517 = vmin.f32 %v513, %v200
        %v518 = vmin.f32 %v514, %v201
        %v519 = vmin.f32 %v515, %v202
        %v520 = vmin.f32 %v516, %v203
        %v521 = vmin.f32 %v517, %v204
        %v522 = vmin.f32 %v518, %v205
        %v523 = vmin.f32 %v519, %v206
        %v524 = vmin.f32 %v520, %v207
        %v525 = vmin.f32 %v521, %v208
        %v526 = vmin.f32 %v522, %v209
        %v527 = vmin.f32 %v523, %v210
        %v528 = vmin.f32 %v524, %v211
        %v529 = vmin.f32 %v525, %v212
        %v530 = vmin.f32 %v526, %v213
        %v531 = vmin.f32 %v527, %v214
        %v532 = vmin.f32 %v528, %v215
        %v533 = vmin.f32 %v529, %v216
        %v534 = vmin.f32 %v530, %v217
        %v535 = vmin.f32 %v531, %v218
        %v536 = vmin.f32 %v532, %v219
        %v537 = vmin.f32 %v533, %v220
        %v538 = vmin.f32 %v534, %v221
        %v539 = vmin.f32 %v535, %v222
        %v540 = vmin.f32 %v536, %v223
        %v541 = vmin.f32 %v537, %v224
        %v542 = vmin.f32 %v538, %v225
        %v543 = vmin.f32 %v539, %v226
        %v544 = vmin.f32 %v540, %v227
        %v545 = vmin.f32 %v541, %v228
        %v546 = vmin.f32 %v542, %v229
        %v547 = vmin.f32 %v543, %v230
        %v548 = vmin.f32 %v544, %v231
        %v549 = vmin.f32 %v545, %v232
        %v550 = vmin.f32 %v546, %v233
        %v551 = vmin.f32 %v547, %v234
        %v552 = vmin.f32 %v548, %v235
        %v553 = vmin.f32 %v549, %v236
        %v554 = vmin.f32 %v550, %v237
        %v555 = vmin.f32 %v551, %v238
        %v556 = vmin.f32 %v552, %v239
        %v557 = vmin.f32 %v553, %v240
        %v558 = vmin.f32 %v554, %v241
        %v559 = vmin.f32 %v555, %v242
        %v560 = vmin.f32 %v556, %v243
        %v561 = vmin.f32 %v557, %v244
        %v562 = vmin.f32 %v558, %v245
        %v563 = vmin.f32 %v559, %v246
        %v564 = vmin.f32 %v560, %v247
        %v565 = vmin.f32 %v561, %v248
        %v566 = vmin.f32 %v562, %v249
        %v567 = vmin.f32 %v563, %v250
        %v568 = vmin.f32 %v564, %v251
        %v569 = vmin.f32 %v565, %v252
        %v570 = vmin.f32 %v566, %v253
        %v571 = vmin.f32 %v567, %v254
        %v572 = vmin.f32 %v568, %v255
        %v573 = vmin.f32 %v569, %v256
        %v574 = vmin.f32 %v570, %v257
        %v575 = vmin.f32 %v571, %v258
        %v576 = vmin.f32 %v572, %v259
        %v577 = vmin.f32 %v573, %v260
        %v578 = vmin.f32 %v574, %v261
        %v579 = vmin.f32 %v575, %v262
        %v580 = vmin.f32 %v576, %v263
        %v581 = vmin.f32 %v577, %v264
        %v582 = vmin.f32 %v578, %v265
        %v583 = vmin.f32 %v579, %v266
        %v584 = vmin.f32 %v580, %v267
        %v585 = vmin.f32 %v581, %v268
        %v586 = vmin.f32 %v582, %v269
        %v587 = vmin.f32 %v583, %v270
        %v588 = vmin.f32 %v584, %v271
        %v589 = vmin.f32 %v585, %v272
        %v590 = vmin.f32 %v586, %v273
        %v591 = vmin.f32 %v587, %v274
        %v592 = vmin.f32 %v588, %v275
        %v593 = vmin.f32 %v589, %v276
        %v594 = vmin.f32 %v590, %v277
        %v595 = vmin.f32 %v591, %v278
        %v596 = vmin.f32 %v592, %v279
        %v597 = vmin.f32 %v593, %v280
        %v598 = vmin.f32 %v594, %v281
        %v599 = vmin.f32 %v595, %v282
        %v600 = vmin.f32 %v596, %v283
        %v601 = vmin.f32 %v597, %v284
        %v602 = vmin.f32 %v598, %v285
        %v603 = vmin.f32 %v599, %v286
        %v604 = vmin.f32 %v600, %v287
        %v605 = vmin.f32 %v601, %v288
        %v606 = vmin.f32 %v602, %v289
        %v607 = vmin.f32 %v603, %v290
        %v608 = vmin.f32 %v604, %v291
        %v609 = vmin.f32 %v605, %v292
        %v610 = vmin.f32 %v606, %v607
        %v611 = vmin.f32 %v608, %v609
        %v612 = vmin.f32 %v610, %v611
        %613 = vmin.xlane.f32.xlu0 %v612
        %v614 = vpop.xlane.xlu0 %613
        %v615 = vsub.f32 %v453, %v614
        %v616 = vadd.f32 %v615, 1e-10
        %v617 = vrcp.pop %v616
        %v618 = vsub.f32 %v133, %v614
        %v619 = vsub.f32 %v134, %v614
        %v620 = vsub.f32 %v135, %v614
        %v621 = vsub.f32 %v136, %v614
        %v622 = vsub.f32 %v137, %v614
        %v623 = vsub.f32 %v138, %v614
        %v624 = vsub.f32 %v139, %v614
        %v625 = vsub.f32 %v140, %v614
        %v626 = vsub.f32 %v141, %v614
        %v627 = vsub.f32 %v142, %v614
        %v628 = vsub.f32 %v143, %v614
        %v629 = vsub.f32 %v144, %v614
        %v630 = vsub.f32 %v145, %v614
        %v631 = vsub.f32 %v146, %v614
        %v632 = vsub.f32 %v147, %v614
        %v633 = vsub.f32 %v148, %v614
        %v634 = vsub.f32 %v149, %v614
        %v635 = vsub.f32 %v150, %v614
        %v636 = vsub.f32 %v151, %v614
        %v637 = vsub.f32 %v152, %v614
        %v638 = vsub.f32 %v153, %v614
        %v639 = vsub.f32 %v154, %v614
        %v640 = vsub.f32 %v155, %v614
        %v641 = vsub.f32 %v156, %v614
        %v642 = vsub.f32 %v157, %v614
        %v643 = vsub.f32 %v158, %v614
        %v644 = vsub.f32 %v159, %v614
        %v645 = vsub.f32 %v160, %v614
        %v646 = vsub.f32 %v161, %v614
        %v647 = vsub.f32 %v162, %v614
        %v648 = vsub.f32 %v163, %v614
        %v649 = vsub.f32 %v164, %v614
        %v650 = vsub.f32 %v165, %v614
        %v651 = vsub.f32 %v166, %v614
        %v652 = vsub.f32 %v167, %v614
        %v653 = vsub.f32 %v168, %v614
        %v654 = vsub.f32 %v169, %v614
        %v655 = vsub.f32 %v170, %v614
        %v656 = vsub.f32 %v171, %v614
        %v657 = vsub.f32 %v172, %v614
        %v658 = vsub.f32 %v173, %v614
        %v659 = vsub.f32 %v174, %v614
        %v660 = vsub.f32 %v175, %v614
        %v661 = vsub.f32 %v176, %v614
        %v662 = vsub.f32 %v177, %v614
        %v663 = vsub.f32 %v178, %v614
        %v664 = vsub.f32 %v179, %v614
        %v665 = vsub.f32 %v180, %v614
        %v666 = vsub.f32 %v181, %v614
        %v667 = vsub.f32 %v182, %v614
        %v668 = vsub.f32 %v183, %v614
        %v669 = vsub.f32 %v184, %v614
        %v670 = vsub.f32 %v185, %v614
        %v671 = vsub.f32 %v186, %v614
        %v672 = vsub.f32 %v187, %v614
        %v673 = vsub.f32 %v188, %v614
        %v674 = vsub.f32 %v189, %v614
        %v675 = vsub.f32 %v190, %v614
        %v676 = vsub.f32 %v191, %v614
        %v677 = vsub.f32 %v192, %v614
        %v678 = vsub.f32 %v193, %v614
        %v679 = vsub.f32 %v194, %v614
        %v680 = vsub.f32 %v195, %v614
        %v681 = vsub.f32 %v196, %v614
        %v682 = vsub.f32 %v197, %v614
        %v683 = vsub.f32 %v198, %v614
        %v684 = vsub.f32 %v199, %v614
        %v685 = vsub.f32 %v200, %v614
        %v686 = vsub.f32 %v201, %v614
        %v687 = vsub.f32 %v202, %v614
        %v688 = vsub.f32 %v203, %v614
        %v689 = vsub.f32 %v204, %v614
        %v690 = vsub.f32 %v205, %v614
        %v691 = vsub.f32 %v206, %v614
        %v692 = vsub.f32 %v207, %v614
        %v693 = vsub.f32 %v208, %v614
        %v694 = vsub.f32 %v209, %v614
        %v695 = vsub.f32 %v210, %v614
        %v696 = vsub.f32 %v211, %v614
        %v697 = vsub.f32 %v212, %v614
        %v698 = vsub.f32 %v213, %v614
        %v699 = vsub.f32 %v214, %v614
        %v700 = vsub.f32 %v215, %v614
        %v701 = vsub.f32 %v216, %v614
        %v702 = vsub.f32 %v217, %v614
        %v703 = vsub.f32 %v218, %v614
        %v704 = vsub.f32 %v219, %v614
        %v705 = vsub.f32 %v220, %v614
        %v706 = vsub.f32 %v221, %v614
        %v707 = vsub.f32 %v222, %v614
        %v708 = vsub.f32 %v223, %v614
        %v709 = vsub.f32 %v224, %v614
        %v710 = vsub.f32 %v225, %v614
        %v711 = vsub.f32 %v226, %v614
        %v712 = vsub.f32 %v227, %v614
        %v713 = vsub.f32 %v228, %v614
        %v714 = vsub.f32 %v229, %v614
        %v715 = vsub.f32 %v230, %v614
        %v716 = vsub.f32 %v231, %v614
        %v717 = vsub.f32 %v232, %v614
        %v718 = vsub.f32 %v233, %v614
        %v719 = vsub.f32 %v234, %v614
        %v720 = vsub.f32 %v235, %v614
        %v721 = vsub.f32 %v236, %v614
        %v722 = vsub.f32 %v237, %v614
        %v723 = vsub.f32 %v238, %v614
        %v724 = vsub.f32 %v239, %v614
        %v725 = vsub.f32 %v240, %v614
        %v726 = vsub.f32 %v241, %v614
        %v727 = vsub.f32 %v242, %v614
        %v728 = vsub.f32 %v243, %v614
        %v729 = vsub.f32 %v244, %v614
        %v730 = vsub.f32 %v245, %v614
        %v731 = vsub.f32 %v246, %v614
        %v732 = vsub.f32 %v247, %v614
        %v733 = vsub.f32 %v248, %v614
        %v734 = vsub.f32 %v249, %v614
        %v735 = vsub.f32 %v250, %v614
        %v736 = vsub.f32 %v251, %v614
        %v737 = vsub.f32 %v252, %v614
        %v738 = vsub.f32 %v253, %v614
        %v739 = vsub.f32 %v254, %v614
        %v740 = vsub.f32 %v255, %v614
        %v741 = vsub.f32 %v256, %v614
        %v742 = vsub.f32 %v257, %v614
        %v743 = vsub.f32 %v258, %v614
        %v744 = vsub.f32 %v259, %v614
        %v745 = vsub.f32 %v260, %v614
        %v746 = vsub.f32 %v261, %v614
        %v747 = vsub.f32 %v262, %v614
        %v748 = vsub.f32 %v263, %v614
        %v749 = vsub.f32 %v264, %v614
        %v750 = vsub.f32 %v265, %v614
        %v751 = vsub.f32 %v266, %v614
        %v752 = vsub.f32 %v267, %v614
        %v753 = vsub.f32 %v268, %v614
        %v754 = vsub.f32 %v269, %v614
        %v755 = vsub.f32 %v270, %v614
        %v756 = vsub.f32 %v271, %v614
        %v757 = vsub.f32 %v272, %v614
        %v758 = vsub.f32 %v273, %v614
        %v759 = vsub.f32 %v274, %v614
        %v760 = vsub.f32 %v275, %v614
        %v761 = vsub.f32 %v276, %v614
        %v762 = vsub.f32 %v277, %v614
        %v763 = vsub.f32 %v278, %v614
        %v764 = vsub.f32 %v279, %v614
        %v765 = vsub.f32 %v280, %v614
        %v766 = vsub.f32 %v281, %v614
        %v767 = vsub.f32 %v282, %v614
        %v768 = vsub.f32 %v283, %v614
        %v769 = vsub.f32 %v284, %v614
        %v770 = vsub.f32 %v285, %v614
        %v771 = vsub.f32 %v286, %v614
        %v772 = vsub.f32 %v287, %v614
        %v773 = vsub.f32 %v288, %v614
        %v774 = vsub.f32 %v289, %v614
        %v775 = vsub.f32 %v290, %v614
        %v776 = vsub.f32 %v291, %v614
        %v777 = vsub.f32 %v292, %v614
        %v778 = vmul.f32 %v618, %v617
        %v779 = vmul.f32 %v619, %v617
        %v780 = vmul.f32 %v620, %v617
        %v781 = vmul.f32 %v621, %v617
        %v782 = vmul.f32 %v622, %v617
        %v783 = vmul.f32 %v623, %v617
        %v784 = vmul.f32 %v624, %v617
        %v785 = vmul.f32 %v625, %v617
        %v786 = vmul.f32 %v626, %v617
        %v787 = vmul.f32 %v627, %v617
        %v788 = vmul.f32 %v628, %v617
        %v789 = vmul.f32 %v629, %v617
        %v790 = vmul.f32 %v630, %v617
        %v791 = vmul.f32 %v631, %v617
        %v792 = vmul.f32 %v632, %v617
        %v793 = vmul.f32 %v633, %v617
        %v794 = vmul.f32 %v634, %v617
        %v795 = vmul.f32 %v635, %v617
        %v796 = vmul.f32 %v636, %v617
        %v797 = vmul.f32 %v637, %v617
        %v798 = vmul.f32 %v638, %v617
        %v799 = vmul.f32 %v639, %v617
        %v800 = vmul.f32 %v640, %v617
        %v801 = vmul.f32 %v641, %v617
        %v802 = vmul.f32 %v642, %v617
        %v803 = vmul.f32 %v643, %v617
        %v804 = vmul.f32 %v644, %v617
        %v805 = vmul.f32 %v645, %v617
        %v806 = vmul.f32 %v646, %v617
        %v807 = vmul.f32 %v647, %v617
        %v808 = vmul.f32 %v648, %v617
        %v809 = vmul.f32 %v649, %v617
        %v810 = vmul.f32 %v650, %v617
        %v811 = vmul.f32 %v651, %v617
        %v812 = vmul.f32 %v652, %v617
        %v813 = vmul.f32 %v653, %v617
        %v814 = vmul.f32 %v654, %v617
        %v815 = vmul.f32 %v655, %v617
        %v816 = vmul.f32 %v656, %v617
        %v817 = vmul.f32 %v657, %v617
        %v818 = vmul.f32 %v658, %v617
        %v819 = vmul.f32 %v659, %v617
        %v820 = vmul.f32 %v660, %v617
        %v821 = vmul.f32 %v661, %v617
        %v822 = vmul.f32 %v662, %v617
        %v823 = vmul.f32 %v663, %v617
        %v824 = vmul.f32 %v664, %v617
        %v825 = vmul.f32 %v665, %v617
        %v826 = vmul.f32 %v666, %v617
        %v827 = vmul.f32 %v667, %v617
        %v828 = vmul.f32 %v668, %v617
        %v829 = vmul.f32 %v669, %v617
        %v830 = vmul.f32 %v670, %v617
        %v831 = vmul.f32 %v671, %v617
        %v832 = vmul.f32 %v672, %v617
        %v833 = vmul.f32 %v673, %v617
        %v834 = vmul.f32 %v674, %v617
        %v835 = vmul.f32 %v675, %v617
        %v836 = vmul.f32 %v676, %v617
        %v837 = vmul.f32 %v677, %v617
        %v838 = vmul.f32 %v678, %v617
        %v839 = vmul.f32 %v679, %v617
        %v840 = vmul.f32 %v680, %v617
        %v841 = vmul.f32 %v681, %v617
        %v842 = vmul.f32 %v682, %v617
        %v843 = vmul.f32 %v683, %v617
        %v844 = vmul.f32 %v684, %v617
        %v845 = vmul.f32 %v685, %v617
        %v846 = vmul.f32 %v686, %v617
        %v847 = vmul.f32 %v687, %v617
        %v848 = vmul.f32 %v688, %v617
        %v849 = vmul.f32 %v689, %v617
        %v850 = vmul.f32 %v690, %v617
        %v851 = vmul.f32 %v691, %v617
        %v852 = vmul.f32 %v692, %v617
        %v853 = vmul.f32 %v693, %v617
        %v854 = vmul.f32 %v694, %v617
        %v855 = vmul.f32 %v695, %v617
        %v856 = vmul.f32 %v696, %v617
        %v857 = vmul.f32 %v697, %v617
        %v858 = vmul.f32 %v698, %v617
        %v859 = vmul.f32 %v699, %v617
        %v860 = vmul.f32 %v700, %v617
        %v861 = vmul.f32 %v701, %v617
        %v862 = vmul.f32 %v702, %v617
        %v863 = vmul.f32 %v703, %v617
        %v864 = vmul.f32 %v704, %v617
        %v865 = vmul.f32 %v705, %v617
        %v866 = vmul.f32 %v706, %v617
        %v867 = vmul.f32 %v707, %v617
        %v868 = vmul.f32 %v708, %v617
        %v869 = vmul.f32 %v709, %v617
        %v870 = vmul.f32 %v710, %v617
        %v871 = vmul.f32 %v711, %v617
        %v872 = vmul.f32 %v712, %v617
        %v873 = vmul.f32 %v713, %v617
        %v874 = vmul.f32 %v714, %v617
        %v875 = vmul.f32 %v715, %v617
        %v876 = vmul.f32 %v716, %v617
        %v877 = vmul.f32 %v717, %v617
        %v878 = vmul.f32 %v718, %v617
        %v879 = vmul.f32 %v719, %v617
        %v880 = vmul.f32 %v720, %v617
        %v881 = vmul.f32 %v721, %v617
        %v882 = vmul.f32 %v722, %v617
        %v883 = vmul.f32 %v723, %v617
        %v884 = vmul.f32 %v724, %v617
        %v885 = vmul.f32 %v725, %v617
        %v886 = vmul.f32 %v726, %v617
        %v887 = vmul.f32 %v727, %v617
        %v888 = vmul.f32 %v728, %v617
        %v889 = vmul.f32 %v729, %v617
        %v890 = vmul.f32 %v730, %v617
        %v891 = vmul.f32 %v731, %v617
        %v892 = vmul.f32 %v732, %v617
        %v893 = vmul.f32 %v733, %v617
        %v894 = vmul.f32 %v734, %v617
        %v895 = vmul.f32 %v735, %v617
        %v896 = vmul.f32 %v736, %v617
        %v897 = vmul.f32 %v737, %v617
        %v898 = vmul.f32 %v738, %v617
        %v899 = vmul.f32 %v739, %v617
        %v900 = vmul.f32 %v740, %v617
        %v901 = vmul.f32 %v741, %v617
        %v902 = vmul.f32 %v742, %v617
        %v903 = vmul.f32 %v743, %v617
        %v904 = vmul.f32 %v744, %v617
        %v905 = vmul.f32 %v745, %v617
        %v906 = vmul.f32 %v746, %v617
        %v907 = vmul.f32 %v747, %v617
        %v908 = vmul.f32 %v748, %v617
        %v909 = vmul.f32 %v749, %v617
        %v910 = vmul.f32 %v750, %v617
        %v911 = vmul.f32 %v751, %v617
        %v912 = vmul.f32 %v752, %v617
        %v913 = vmul.f32 %v753, %v617
        %v914 = vmul.f32 %v754, %v617
        %v915 = vmul.f32 %v755, %v617
        %v916 = vmul.f32 %v756, %v617
        %v917 = vmul.f32 %v757, %v617
        %v918 = vmul.f32 %v758, %v617
        %v919 = vmul.f32 %v759, %v617
        %v920 = vmul.f32 %v760, %v617
        %v921 = vmul.f32 %v761, %v617
        %v922 = vmul.f32 %v762, %v617
        %v923 = vmul.f32 %v763, %v617
        %v924 = vmul.f32 %v764, %v617
        %v925 = vmul.f32 %v765, %v617
        %v926 = vmul.f32 %v766, %v617
        %v927 = vmul.f32 %v767, %v617
        %v928 = vmul.f32 %v768, %v617
        %v929 = vmul.f32 %v769, %v617
        %v930 = vmul.f32 %v770, %v617
        %v931 = vmul.f32 %v771, %v617
        %v932 = vmul.f32 %v772, %v617
        %v933 = vmul.f32 %v773, %v617
        %v934 = vmul.f32 %v774, %v617
        %v935 = vmul.f32 %v775, %v617
        %v936 = vmul.f32 %v776, %v617
        %v937 = vmul.f32 %v777, %v617
        %938 = vst [vmem:[%s132] sm:$0xff] %v778
        %939 = vst [vmem:[%s132 + $0x8] sm:$0xff] %v779
        %940 = vst [vmem:[%s132 + $0x10] sm:$0xff] %v780
        %941 = vst [vmem:[%s132 + $0x18] sm:$0xff] %v781
        %942 = vst [vmem:[%s132 + $0x20] sm:$0xff] %v782
        %943 = vst [vmem:[%s132 + $0x28] sm:$0xff] %v783
        %944 = vst [vmem:[%s132 + $0x30] sm:$0xff] %v784
        %945 = vst [vmem:[%s132 + $0x38] sm:$0xff] %v785
        %946 = vst [vmem:[%s132 + $0x40] sm:$0xff] %v786
        %947 = vst [vmem:[%s132 + $0x48] sm:$0xff] %v787
        %948 = vst [vmem:[%s132 + $0x50] sm:$0xff] %v788
        %949 = vst [vmem:[%s132 + $0x58] sm:$0xff] %v789
        %950 = vst [vmem:[%s132 + $0x60] sm:$0xff] %v790
        %951 = vst [vmem:[%s132 + $0x68] sm:$0xff] %v791
        %952 = vst [vmem:[%s132 + $0x70] sm:$0xff] %v792
        %953 = vst [vmem:[%s132 + $0x78] sm:$0xff] %v793
        %954 = vst [vmem:[%s132 + $0x80] sm:$0xff] %v794
        %955 = vst [vmem:[%s132 + $0x88] sm:$0xff] %v795
        %956 = vst [vmem:[%s132 + $0x90] sm:$0xff] %v796
        %957 = vst [vmem:[%s132 + $0x98] sm:$0xff] %v797
        %958 = vst [vmem:[%s132 + $0xa0] sm:$0xff] %v798
        %959 = vst [vmem:[%s132 + $0xa8] sm:$0xff] %v799
        %960 = vst [vmem:[%s132 + $0xb0] sm:$0xff] %v800
        %961 = vst [vmem:[%s132 + $0xb8] sm:$0xff] %v801
        %962 = vst [vmem:[%s132 + $0xc0] sm:$0xff] %v802
        %963 = vst [vmem:[%s132 + $0xc8] sm:$0xff] %v803
        %964 = vst [vmem:[%s132 + $0xd0] sm:$0xff] %v804
        %965 = vst [vmem:[%s132 + $0xd8] sm:$0xff] %v805
        %966 = vst [vmem:[%s132 + $0xe0] sm:$0xff] %v806
        %967 = vst [vmem:[%s132 + $0xe8] sm:$0xff] %v807
        %968 = vst [vmem:[%s132 + $0xf0] sm:$0xff] %v808
        %969 = vst [vmem:[%s132 + $0xf8] sm:$0xff] %v809
        %970 = vst [vmem:[%s132 + $0x100] sm:$0xff] %v810
        %971 = vst [vmem:[%s132 + $0x108] sm:$0xff] %v811
        %972 = vst [vmem:[%s132 + $0x110] sm:$0xff] %v812
        %973 = vst [vmem:[%s132 + $0x118] sm:$0xff] %v813
        %974 = vst [vmem:[%s132 + $0x120] sm:$0xff] %v814
        %975 = vst [vmem:[%s132 + $0x128] sm:$0xff] %v815
        %976 = vst [vmem:[%s132 + $0x130] sm:$0xff] %v816
        %977 = vst [vmem:[%s132 + $0x138] sm:$0xff] %v817
        %978 = vst [vmem:[%s132 + $0x140] sm:$0xff] %v818
        %979 = vst [vmem:[%s132 + $0x148] sm:$0xff] %v819
        %980 = vst [vmem:[%s132 + $0x150] sm:$0xff] %v820
        %981 = vst [vmem:[%s132 + $0x158] sm:$0xff] %v821
        %982 = vst [vmem:[%s132 + $0x160] sm:$0xff] %v822
        %983 = vst [vmem:[%s132 + $0x168] sm:$0xff] %v823
        %984 = vst [vmem:[%s132 + $0x170] sm:$0xff] %v824
        %985 = vst [vmem:[%s132 + $0x178] sm:$0xff] %v825
        %986 = vst [vmem:[%s132 + $0x180] sm:$0xff] %v826
        %987 = vst [vmem:[%s132 + $0x188] sm:$0xff] %v827
        %988 = vst [vmem:[%s132 + $0x190] sm:$0xff] %v828
        %989 = vst [vmem:[%s132 + $0x198] sm:$0xff] %v829
        %990 = vst [vmem:[%s132 + $0x1a0] sm:$0xff] %v830
        %991 = vst [vmem:[%s132 + $0x1a8] sm:$0xff] %v831
        %992 = vst [vmem:[%s132 + $0x1b0] sm:$0xff] %v832
        %993 = vst [vmem:[%s132 + $0x1b8] sm:$0xff] %v833
        %994 = vst [vmem:[%s132 + $0x1c0] sm:$0xff] %v834
        %995 = vst [vmem:[%s132 + $0x1c8] sm:$0xff] %v835
        %996 = vst [vmem:[%s132 + $0x1d0] sm:$0xff] %v836
        %997 = vst [vmem:[%s132 + $0x1d8] sm:$0xff] %v837
        %998 = vst [vmem:[%s132 + $0x1e0] sm:$0xff] %v838
        %999 = vst [vmem:[%s132 + $0x1e8] sm:$0xff] %v839
        %1000 = vst [vmem:[%s132 + $0x1f0] sm:$0xff] %v840
        %1001 = vst [vmem:[%s132 + $0x1f8] sm:$0xff] %v841
        %1002 = vst [vmem:[%s132 + $0x200] sm:$0xff] %v842
        %1003 = vst [vmem:[%s132 + $0x208] sm:$0xff] %v843
        %1004 = vst [vmem:[%s132 + $0x210] sm:$0xff] %v844
        %1005 = vst [vmem:[%s132 + $0x218] sm:$0xff] %v845
        %1006 = vst [vmem:[%s132 + $0x220] sm:$0xff] %v846
        %1007 = vst [vmem:[%s132 + $0x228] sm:$0xff] %v847
        %1008 = vst [vmem:[%s132 + $0x230] sm:$0xff] %v848
        %1009 = vst [vmem:[%s132 + $0x238] sm:$0xff] %v849
        %1010 = vst [vmem:[%s132 + $0x240] sm:$0xff] %v850
        %1011 = vst [vmem:[%s132 + $0x248] sm:$0xff] %v851
        %1012 = vst [vmem:[%s132 + $0x250] sm:$0xff] %v852
        %1013 = vst [vmem:[%s132 + $0x258] sm:$0xff] %v853
        %1014 = vst [vmem:[%s132 + $0x260] sm:$0xff] %v854
        %1015 = vst [vmem:[%s132 + $0x268] sm:$0xff] %v855
        %1016 = vst [vmem:[%s132 + $0x270] sm:$0xff] %v856
        %1017 = vst [vmem:[%s132 + $0x278] sm:$0xff] %v857
        %1018 = vst [vmem:[%s132 + $0x280] sm:$0xff] %v858
        %1019 = vst [vmem:[%s132 + $0x288] sm:$0xff] %v859
        %1020 = vst [vmem:[%s132 + $0x290] sm:$0xff] %v860
        %1021 = vst [vmem:[%s132 + $0x298] sm:$0xff] %v861
        %1022 = vst [vmem:[%s132 + $0x2a0] sm:$0xff] %v862
        %1023 = vst [vmem:[%s132 + $0x2a8] sm:$0xff] %v863
        %1024 = vst [vmem:[%s132 + $0x2b0] sm:$0xff] %v864
        %1025 = vst [vmem:[%s132 + $0x2b8] sm:$0xff] %v865
        %1026 = vst [vmem:[%s132 + $0x2c0] sm:$0xff] %v866
        %1027 = vst [vmem:[%s132 + $0x2c8] sm:$0xff] %v867
        %1028 = vst [vmem:[%s132 + $0x2d0] sm:$0xff] %v868
        %1029 = vst [vmem:[%s132 + $0x2d8] sm:$0xff] %v869
        %1030 = vst [vmem:[%s132 + $0x2e0] sm:$0xff] %v870
        %1031 = vst [vmem:[%s132 + $0x2e8] sm:$0xff] %v871
        %1032 = vst [vmem:[%s132 + $0x2f0] sm:$0xff] %v872
        %1033 = vst [vmem:[%s132 + $0x2f8] sm:$0xff] %v873
        %1034 = vst [vmem:[%s132 + $0x300] sm:$0xff] %v874
        %1035 = vst [vmem:[%s132 + $0x308] sm:$0xff] %v875
        %1036 = vst [vmem:[%s132 + $0x310] sm:$0xff] %v876
        %1037 = vst [vmem:[%s132 + $0x318] sm:$0xff] %v877
        %1038 = vst [vmem:[%s132 + $0x320] sm:$0xff] %v878
        %1039 = vst [vmem:[%s132 + $0x328] sm:$0xff] %v879
        %1040 = vst [vmem:[%s132 + $0x330] sm:$0xff] %v880
        %1041 = vst [vmem:[%s132 + $0x338] sm:$0xff] %v881
        %1042 = vst [vmem:[%s132 + $0x340] sm:$0xff] %v882
        %1043 = vst [vmem:[%s132 + $0x348] sm:$0xff] %v883
        %1044 = vst [vmem:[%s132 + $0x350] sm:$0xff] %v884
        %1045 = vst [vmem:[%s132 + $0x358] sm:$0xff] %v885
        %1046 = vst [vmem:[%s132 + $0x360] sm:$0xff] %v886
        %1047 = vst [vmem:[%s132 + $0x368] sm:$0xff] %v887
        %1048 = vst [vmem:[%s132 + $0x370] sm:$0xff] %v888
        %1049 = vst [vmem:[%s132 + $0x378] sm:$0xff] %v889
        %1050 = vst [vmem:[%s132 + $0x380] sm:$0xff] %v890
        %1051 = vst [vmem:[%s132 + $0x388] sm:$0xff] %v891
        %1052 = vst [vmem:[%s132 + $0x390] sm:$0xff] %v892
        %1053 = vst [vmem:[%s132 + $0x398] sm:$0xff] %v893
        %1054 = vst [vmem:[%s132 + $0x3a0] sm:$0xff] %v894
        %1055 = vst [vmem:[%s132 + $0x3a8] sm:$0xff] %v895
        %1056 = vst [vmem:[%s132 + $0x3b0] sm:$0xff] %v896
        %1057 = vst [vmem:[%s132 + $0x3b8] sm:$0xff] %v897
        %1058 = vst [vmem:[%s132 + $0x3c0] sm:$0xff] %v898
        %1059 = vst [vmem:[%s132 + $0x3c8] sm:$0xff] %v899
        %1060 = vst [vmem:[%s132 + $0x3d0] sm:$0xff] %v900
        %1061 = vst [vmem:[%s132 + $0x3d8] sm:$0xff] %v901
        %1062 = vst [vmem:[%s132 + $0x3e0] sm:$0xff] %v902
        %1063 = vst [vmem:[%s132 + $0x3e8] sm:$0xff] %v903
        %1064 = vst [vmem:[%s132 + $0x3f0] sm:$0xff] %v904
        %1065 = vst [vmem:[%s132 + $0x3f8] sm:$0xff] %v905
        %1066 = vst [vmem:[%s132 + $0x400] sm:$0xff] %v906
        %1067 = vst [vmem:[%s132 + $0x408] sm:$0xff] %v907
        %1068 = vst [vmem:[%s132 + $0x410] sm:$0xff] %v908
        %1069 = vst [vmem:[%s132 + $0x418] sm:$0xff] %v909
        %1070 = vst [vmem:[%s132 + $0x420] sm:$0xff] %v910
        %1071 = vst [vmem:[%s132 + $0x428] sm:$0xff] %v911
        %1072 = vst [vmem:[%s132 + $0x430] sm:$0xff] %v912
        %1073 = vst [vmem:[%s132 + $0x438] sm:$0xff] %v913
        %1074 = vst [vmem:[%s132 + $0x440] sm:$0xff] %v914
        %1075 = vst [vmem:[%s132 + $0x448] sm:$0xff] %v915
        %1076 = vst [vmem:[%s132 + $0x450] sm:$0xff] %v916
        %1077 = vst [vmem:[%s132 + $0x458] sm:$0xff] %v917
        %1078 = vst [vmem:[%s132 + $0x460] sm:$0xff] %v918
        %1079 = vst [vmem:[%s132 + $0x468] sm:$0xff] %v919
        %1080 = vst [vmem:[%s132 + $0x470] sm:$0xff] %v920
        %1081 = vst [vmem:[%s132 + $0x478] sm:$0xff] %v921
        %1082 = vst [vmem:[%s132 + $0x480] sm:$0xff] %v922
        %1083 = vst [vmem:[%s132 + $0x488] sm:$0xff] %v923
        %1084 = vst [vmem:[%s132 + $0x490] sm:$0xff] %v924
        %1085 = vst [vmem:[%s132 + $0x498] sm:$0xff] %v925
        %1086 = vst [vmem:[%s132 + $0x4a0] sm:$0xff] %v926
        %1087 = vst [vmem:[%s132 + $0x4a8] sm:$0xff] %v927
        %1088 = vst [vmem:[%s132 + $0x4b0] sm:$0xff] %v928
        %1089 = vst [vmem:[%s132 + $0x4b8] sm:$0xff] %v929
        %1090 = vst [vmem:[%s132 + $0x4c0] sm:$0xff] %v930
        %1091 = vst [vmem:[%s132 + $0x4c8] sm:$0xff] %v931
        %1092 = vst [vmem:[%s132 + $0x4d0] sm:$0xff] %v932
        %1093 = vst [vmem:[%s132 + $0x4d8] sm:$0xff] %v933
        %1094 = vst [vmem:[%s132 + $0x4e0] sm:$0xff] %v934
        %1095 = vst [vmem:[%s132 + $0x4e8] sm:$0xff] %v935
        %1096 = vst [vmem:[%s132 + $0x4f0] sm:$0xff] %v936
        %1097 = vst [vmem:[%s132 + $0x4f8] sm:$0xff] %v937
        %s1098 = sand.u32 %s52, 1
        %s1099 = scalar_lea.sflag [#allocation4], %s1098
        %s1100 = sand.u32 %s52, 1
        %s1101 = smul.addr %s1100, 1280
        %s1102 = scalar_lea.vmem [#allocation5], %s1101
        // Predicated region
        $region29: #{tpu_custom_call.1} parent=23 // pred_check
          %p1103 = pneg %p62
        $region30: #{tpu_custom_call.1} parent=23 // pred_check_branch
          %1105 = sbr.rel (%p1103) target = $region32
        $region31: #{tpu_custom_call.1} parent=23 // pred_region
          %s1107 = ssub.s32 20480, 20480
          %1108 = vsyncadd %s1099, %s1107
          %s1109 = smul.addr %s18, 160
          %s1110 = smul.addr %s1109, 128
          %s1111 = scalar_lea.hbm %s1, %s1110
          %s1113 = sshll.u32 %s1102, 4
          %s1114 = int_to_ptr.vmem [resolvable:$true] %s1113
          %1116 = dma.vmem_to_hbm [thread:$0]  %s1114, 20480, %s1111, %s1099
        $region32: #{tpu_custom_call.1} parent=23 // pred_fallthru
          _
      $region24: #{tpu_custom_call.1} parent=5 // pred_fallthru
        _
      %p1117 = scmp.le.s32.totalorder 2, %s13
      // Predicated region
      $region33: #{tpu_custom_call.1} parent=5 // pred_check
        %p1118 = pneg %p1117
      $region34: #{tpu_custom_call.1} parent=5 // pred_check_branch
        %1120 = sbr.rel (%p1118) target = $region36
      $region35: #{tpu_custom_call.1} parent=5 // pred_region
        %s1121 = ssub.s32 %s13, 2
        // Predicated region
        $region37: #{tpu_custom_call.1} parent=35 // pred_check
          %p1122 = pneg %p68
        $region38: #{tpu_custom_call.1} parent=35 // pred_check_branch
          %1124 = sbr.rel (%p1122) target = $region40
        $region39: #{tpu_custom_call.1} parent=35 // pred_region
          %s1125 = sand.u32 %s53, 1
          %s1126 = scalar_lea.sflag [#allocation4], %s1125
          %s1127 = sand.u32 %s53, 1
          %s1128 = smul.addr %s1127, 1280
          %s1129 = scalar_lea.vmem [#allocation5], %s1128
          %1130 = dma.done %s1126, 20480
        $region40: #{tpu_custom_call.1} parent=35 // pred_fallthru
          _
      $region36: #{tpu_custom_call.1} parent=5 // pred_fallthru
        _
    $region6: #{tpu_custom_call.1} parent=1 // loop_footer
      %s17 = sadd.s32 1, %s13
    $region7: #{tpu_custom_call.1} parent=1 // loop_footer_branch
      %12 = sbr.rel target = $region3
    $region8: #{tpu_custom_call.1} parent=1 // loop_exit
      _
    %1131 = vsyncpa [#allocation3], 1
    %s1132 = scalar_lea.sflag [#allocation3], 1
    %1133 = vsyncpa %s1132, 1
    %1134 = vsyncpa [#allocation4], 1
    %s1135 = scalar_lea.sflag [#allocation4], 1
    %1136 = vsyncpa %s1135, 1

</llo_original>
